<compile_context>
chip_gen: v7x
topology: tpu7x:2x2x1
jax: 0.10.0
libtpu: 0.0.40
codegen_flags: <defaults>
</compile_context>

<pallas_src>
import jax
import jax.numpy as jnp
from jax.experimental import pallas as pl
from jax.experimental.pallas import tpu as pltpu


def _round_up(x, m):
    return ((x + m - 1) // m) * m


# ---------------------------------------------------------------------------
# Kernel 1: fused NAC gate   W = tanh(W_hat) * sigmoid(M_hat)
# Runs once per forward (hoisted out of the batch-tiled matmul kernel).
# Gate math stays f32 (v5e has no bf16 VPU/EUP); output is the matmul dtype.
# ---------------------------------------------------------------------------
def _gate_kernel(w_hat_ref, m_hat_ref, w_ref):
    g = jnp.tanh(w_hat_ref[...]) * jax.nn.sigmoid(m_hat_ref[...])
    w_ref[...] = g.astype(w_ref.dtype)


def _fuse_gates(w_hat_stack, m_hat_stack, compute_dtype):
    n_layers, d_pad, _ = w_hat_stack.shape
    tr = 256 if d_pad % 256 == 0 else 128
    spec = pl.BlockSpec((1, tr, d_pad), lambda l, r: (l, r, 0))
    cost = pl.CostEstimate(
        flops=n_layers * d_pad * d_pad,
        transcendentals=2 * n_layers * d_pad * d_pad,
        bytes_accessed=(2 * 4 + jnp.dtype(compute_dtype).itemsize)
        * n_layers * d_pad * d_pad,
    )
    return pl.pallas_call(
        _gate_kernel,
        out_shape=jax.ShapeDtypeStruct((n_layers, d_pad, d_pad), compute_dtype),
        grid=(n_layers, d_pad // tr),
        in_specs=[spec, spec],
        out_specs=spec,
        compiler_params=pltpu.CompilerParams(
            dimension_semantics=("parallel", "parallel")),
        cost_estimate=cost,
    )(w_hat_stack, m_hat_stack)


# ---------------------------------------------------------------------------
# Kernel 2: fused stack of matmuls for one batch tile.
#   x tile (tm, D_pad)  x  gates (n_layers, D_pad, D_pad)  ->  out (tm, D_pad)
# Intermediate activations ping-pong between two VMEM scratch buffers; the
# gated weights are VMEM-resident across all batch tiles (constant index_map).
# ---------------------------------------------------------------------------
def _stacked_matmul_kernel(x_ref, w_ref, o_ref, act0, act1):
    n_layers = w_ref.shape[0]          # static
    bufs = (act0, act1)
    bufs[0][...] = x_ref[...].astype(bufs[0].dtype)
    for layer in range(n_layers):      # static Python loop -> fully unrolled
        src = bufs[layer % 2]
        y = jnp.dot(src[...], w_ref[layer],
                    preferred_element_type=jnp.float32)
        if layer == n_layers - 1:
            o_ref[...] = y.astype(o_ref.dtype)
        else:
            dst = bufs[(layer + 1) % 2]
            dst[...] = y.astype(dst.dtype)


def stacked_nac_forward(x, params, *, compute_dtype=jnp.bfloat16):
    """x: (B, in_dim); params: list of (W_hat, M_hat), each (d_in, d_out)."""
    assert len(params) >= 1
    B, in_dim = x.shape
    dims = [in_dim] + [w.shape[1] for w, _ in params]
    for i, (w_hat, m_hat) in enumerate(params):
        assert w_hat.shape == m_hat.shape
        assert w_hat.shape[0] == dims[i]
    out_dim = dims[-1]
    n_layers = len(params)
    cdt = jnp.dtype(compute_dtype)

    # Lane-dense internal width: pad every feature dim to one common multiple
    # of 128 so every MXU tile and the output store are unmasked full-lane.
    d_pad = _round_up(max(dims), 128)

    # Batch tile: multiple of 8 sublanes; 256 rows for large batches.
    tm = 256 if B >= 256 else _round_up(B, 8)
    b_pad = _round_up(B, tm)

    # Zero-pad + stack the raw parameters. tanh(0)*sigmoid(0) == 0, so the
    # padded rows/cols of the fused gate are exactly zero -> padding is inert
    # through the whole stack.
    w_hat_stack = jnp.stack([
        jnp.pad(w, ((0, d_pad - w.shape[0]), (0, d_pad - w.shape[1])))
        for w, _ in params])
    m_hat_stack = jnp.stack([
        jnp.pad(m, ((0, d_pad - m.shape[0]), (0, d_pad - m.shape[1])))
        for _, m in params])

    # Gate kernel: once per forward, NOT once per batch tile.
    gates = _fuse_gates(w_hat_stack, m_hat_stack, cdt)

    x_pad = jnp.pad(x, ((0, b_pad - B), (0, d_pad - in_dim)))

    # ---- VMEM budget sanity (v7x has 64 MiB / TC, ~32 MiB scoped default) --
    weights_bytes = 2 * n_layers * d_pad * d_pad * cdt.itemsize   # double-buffered
    act_bytes = 2 * tm * d_pad * cdt.itemsize                     # ping-pong scratch
    io_bytes = 2 * 2 * tm * d_pad * x.dtype.itemsize              # x + out, dbl-buffered
    vmem_bytes = weights_bytes + act_bytes + io_bytes
    # TODO(synk): for hidden dims where the whole gated-weight stack no longer
    # fits VMEM, fall back to per-layer K/N-tiled matmul kernels.
    assert vmem_bytes < 48 * 1024 * 1024, (
        f"fused StackedNAC needs {vmem_bytes / 2**20:.1f} MiB VMEM; "
        "add K/N tiling for this size")

    cost = pl.CostEstimate(
        flops=2 * b_pad * d_pad * d_pad * n_layers,
        transcendentals=0,
        bytes_accessed=(2 * b_pad * d_pad * x.dtype.itemsize
                        + n_layers * d_pad * d_pad * cdt.itemsize),
    )

    out_pad = pl.pallas_call(
        _stacked_matmul_kernel,
        out_shape=jax.ShapeDtypeStruct((b_pad, d_pad), x.dtype),
        grid=(b_pad // tm,),
        in_specs=[
            pl.BlockSpec((tm, d_pad), lambda i: (i, 0)),
            # Same block index for every batch tile -> weights stay VMEM-resident.
            pl.BlockSpec((n_layers, d_pad, d_pad), lambda i: (0, 0, 0)),
        ],
        out_specs=pl.BlockSpec((tm, d_pad), lambda i: (i, 0)),
        scratch_shapes=[
            pltpu.VMEM((tm, d_pad), cdt),
            pltpu.VMEM((tm, d_pad), cdt),
        ],
        compiler_params=pltpu.CompilerParams(
            dimension_semantics=("parallel",)),   # v7x: 2 TCs split batch tiles
        cost_estimate=cost,
    )(x_pad, gates)

    return out_pad[:B, :out_dim]


# ---------------------------------------------------------------------------
# Parameter init (deterministic xavier_uniform_ equivalent)
# ---------------------------------------------------------------------------
def xavier_uniform(key, shape, dtype=jnp.float32):
    fan_in, fan_out = shape
    bound = jnp.sqrt(6.0 / (fan_in + fan_out))
    return jax.random.uniform(key, shape, dtype, minval=-bound, maxval=bound)


def init_stacked_nac_params(key, n_layers, in_dim, out_dim, hidden_dim):
    params = []
    for i in range(n_layers):
        d_in = in_dim if i == 0 else hidden_dim
        d_out = out_dim if i == n_layers - 1 else hidden_dim
        key, kw, km = jax.random.split(key, 3)
        params.append(
            (xavier_uniform(kw, (d_in, d_out)), xavier_uniform(km, (d_in, d_out)))
        )
    return params


if __name__ == "__main__":
    key = jax.random.PRNGKey(0)
    k_x, k_p = jax.random.split(key)

    n_layers, in_dim, out_dim, hidden_dim = 3, 16, 8, 32
    batch = 8

    x = jax.random.normal(k_x, (batch, in_dim), dtype=jnp.float32)
    params = init_stacked_nac_params(k_p, n_layers, in_dim, out_dim, hidden_dim)

    fwd = jax.jit(stacked_nac_forward)
    y = fwd(x, params)
    jax.block_until_ready(y)

    # Reference mirroring the kernel's numerics (f32 gate, bf16 matmul
    # operands, f32 accumulation) -> tight check.
    ref = x
    for w_hat, m_hat in params:
        W = jnp.tanh(w_hat) * jax.nn.sigmoid(m_hat)
        ref = jnp.dot(ref.astype(jnp.bfloat16), W.astype(jnp.bfloat16),
                      preferred_element_type=jnp.float32)
    ref = ref.astype(x.dtype)

    # Pure-f32 reference of the original PyTorch semantics -> loose check
    # (the kernel feeds the MXU bf16 operands, per the v6e/v7x guidance).
    ref_f32 = x
    for w_hat, m_hat in params:
        ref_f32 = ref_f32 @ (jnp.tanh(w_hat) * jax.nn.sigmoid(m_hat))

    assert y.shape == (batch, out_dim)
    assert jnp.allclose(y, ref, atol=1e-3, rtol=1e-3)
    assert jnp.allclose(y, ref_f32, atol=5e-2, rtol=5e-2)

    print("KERNEL_OK")
</pallas_src>

<mosaic_0001>
module attributes {stable_mosaic.version = 11 : i64} {
  func.func @_gate_kernel(%arg0: i32, %arg1: i32, %arg2: memref<1x128x128xf32, #tpu.memory_space<vmem>>, %arg3: memref<1x128x128xf32, #tpu.memory_space<vmem>>, %arg4: memref<1x128x128xbf16, #tpu.memory_space<vmem>>) attributes {dimension_semantics = [#tpu.dimension_semantics<parallel>, #tpu.dimension_semantics<parallel>], iteration_bounds = array<i64: 3, 1>, scalar_prefetch = 0 : i64, scratch_operands = 0 : i64, tpu.core_type = #tpu.core_type<tc>, window_params = [{transform_indices = @transform_0, window_bounds = array<i64: 1, 128, 128>}, {transform_indices = @transform_1, window_bounds = array<i64: 1, 128, 128>}, {transform_indices = @transform_2, window_bounds = array<i64: 1, 128, 128>}]} {
    %c0 = arith.constant 0 : index
    %c0_0 = arith.constant 0 : index
    %c0_1 = arith.constant 0 : index
    %0 = vector.load %arg2[%c0, %c0_0, %c0_1] : memref<1x128x128xf32, #tpu.memory_space<vmem>>, vector<1x128x128xf32>
    %1 = math.tanh %0 : vector<1x128x128xf32>
    %c0_2 = arith.constant 0 : index
    %c0_3 = arith.constant 0 : index
    %c0_4 = arith.constant 0 : index
    %2 = vector.load %arg3[%c0_2, %c0_3, %c0_4] : memref<1x128x128xf32, #tpu.memory_space<vmem>>, vector<1x128x128xf32>
    %3 = arith.negf %2 : vector<1x128x128xf32>
    %4 = math.exp %3 : vector<1x128x128xf32>
    %cst = arith.constant 1.000000e+00 : f32
    %5 = vector.broadcast %cst : f32 to vector<1x128x128xf32>
    %6 = arith.addf %5, %4 : vector<1x128x128xf32>
    %7 = arith.divf %5, %6 : vector<1x128x128xf32>
    %8 = arith.mulf %1, %7 : vector<1x128x128xf32>
    %9 = arith.truncf %8 : vector<1x128x128xf32> to vector<1x128x128xbf16>
    %c0_5 = arith.constant 0 : index
    %c0_6 = arith.constant 0 : index
    %c0_7 = arith.constant 0 : index
    %10 = vector.load %arg4[%c0_5, %c0_6, %c0_7] : memref<1x128x128xbf16, #tpu.memory_space<vmem>>, vector<1x128x128xbf16>
    tpu.vector_store %arg4[%c0_5, %c0_6, %c0_7], %9 {strides = array<i32>} : memref<1x128x128xbf16, #tpu.memory_space<vmem>>, vector<1x128x128xbf16>,
    return
  }
  func.func @transform_0(%arg0: i32, %arg1: i32) -> (i32, i32, i32) {
    %c0_i32 = arith.constant 0 : i32
    %c0_i32_0 = arith.constant 0 : i32
    return %arg0, %arg1, %c0_i32 : i32, i32, i32
  }
  func.func @transform_1(%arg0: i32, %arg1: i32) -> (i32, i32, i32) {
    %c0_i32 = arith.constant 0 : i32
    %c0_i32_0 = arith.constant 0 : i32
    return %arg0, %arg1, %c0_i32 : i32, i32, i32
  }
  func.func @transform_2(%arg0: i32, %arg1: i32) -> (i32, i32, i32) {
    %c0_i32 = arith.constant 0 : i32
    %c0_i32_0 = arith.constant 0 : i32
    return %arg0, %arg1, %c0_i32 : i32, i32, i32
  }
}

module attributes {stable_mosaic.version = 11 : i64} {
  func.func @_stacked_matmul_kernel(%arg0: i32, %arg1: memref<8x128xf32, #tpu.memory_space<vmem>>, %arg2: memref<3x128x128xbf16, #tpu.memory_space<vmem>>, %arg3: memref<8x128xf32, #tpu.memory_space<vmem>>, %arg4: memref<8x128xbf16, #tpu.memory_space<vmem>>, %arg5: memref<8x128xbf16, #tpu.memory_space<vmem>>) attributes {dimension_semantics = [#tpu.dimension_semantics<parallel>], iteration_bounds = array<i64: 1>, scalar_prefetch = 0 : i64, scratch_operands = 2 : i64, tpu.core_type = #tpu.core_type<tc>, window_params = [{transform_indices = @transform_0, window_bounds = array<i64: 8, 128>}, {pipeline_mode = #tpu.pipeline_mode<synchronous>, transform_indices = @transform_1, window_bounds = array<i64: 3, 128, 128>}, {transform_indices = @transform_2, window_bounds = array<i64: 8, 128>}]} {
    %c0 = arith.constant 0 : index
    %c0_0 = arith.constant 0 : index
    %0 = vector.load %arg1[%c0, %c0_0] : memref<8x128xf32, #tpu.memory_space<vmem>>, vector<8x128xf32>
    %1 = arith.truncf %0 : vector<8x128xf32> to vector<8x128xbf16>
    %c0_1 = arith.constant 0 : index
    %c0_2 = arith.constant 0 : index
    %2 = vector.load %arg4[%c0_1, %c0_2] : memref<8x128xbf16, #tpu.memory_space<vmem>>, vector<8x128xbf16>
    tpu.vector_store %arg4[%c0_1, %c0_2], %1 {strides = array<i32>} : memref<8x128xbf16, #tpu.memory_space<vmem>>, vector<8x128xbf16>,
    %c0_3 = arith.constant 0 : index
    %c0_4 = arith.constant 0 : index
    %3 = vector.load %arg4[%c0_3, %c0_4] : memref<8x128xbf16, #tpu.memory_space<vmem>>, vector<8x128xbf16>
    %c0_5 = arith.constant 0 : index
    %c0_6 = arith.constant 0 : index
    %c0_7 = arith.constant 0 : index
    %4 = vector.load %arg2[%c0_5, %c0_6, %c0_7] : memref<3x128x128xbf16, #tpu.memory_space<vmem>>, vector<1x128x128xbf16>
    %5 = vector.shape_cast %4 : vector<1x128x128xbf16> to vector<128x128xbf16>
    %cst = arith.constant dense<0.000000e+00> : vector<8x128xf32>
    %6 = tpu.matmul %3, %5, %cst {dimension_numbers = #tpu.dot_dimension_numbers<[1], [0], [0], [1], [0, 0, 1, 1], [], []>} : vector<8x128xbf16>, vector<128x128xbf16>, vector<8x128xf32> -> vector<8x128xf32>
    %7 = arith.truncf %6 : vector<8x128xf32> to vector<8x128xbf16>
    %c0_8 = arith.constant 0 : index
    %c0_9 = arith.constant 0 : index
    %8 = vector.load %arg5[%c0_8, %c0_9] : memref<8x128xbf16, #tpu.memory_space<vmem>>, vector<8x128xbf16>
    tpu.vector_store %arg5[%c0_8, %c0_9], %7 {strides = array<i32>} : memref<8x128xbf16, #tpu.memory_space<vmem>>, vector<8x128xbf16>,
    %c0_10 = arith.constant 0 : index
    %c0_11 = arith.constant 0 : index
    %9 = vector.load %arg5[%c0_10, %c0_11] : memref<8x128xbf16, #tpu.memory_space<vmem>>, vector<8x128xbf16>
    %c1 = arith.constant 1 : index
    %c0_12 = arith.constant 0 : index
    %c0_13 = arith.constant 0 : index
    %10 = vector.load %arg2[%c1, %c0_12, %c0_13] : memref<3x128x128xbf16, #tpu.memory_space<vmem>>, vector<1x128x128xbf16>
    %11 = vector.shape_cast %10 : vector<1x128x128xbf16> to vector<128x128xbf16>
    %cst_14 = arith.constant dense<0.000000e+00> : vector<8x128xf32>
    %12 = tpu.matmul %9, %11, %cst_14 {dimension_numbers = #tpu.dot_dimension_numbers<[1], [0], [0], [1], [0, 0, 1, 1], [], []>} : vector<8x128xbf16>, vector<128x128xbf16>, vector<8x128xf32> -> vector<8x128xf32>
    %13 = arith.truncf %12 : vector<8x128xf32> to vector<8x128xbf16>
    %c0_15 = arith.constant 0 : index
    %c0_16 = arith.constant 0 : index
    %14 = vector.load %arg4[%c0_15, %c0_16] : memref<8x128xbf16, #tpu.memory_space<vmem>>, vector<8x128xbf16>
    tpu.vector_store %arg4[%c0_15, %c0_16], %13 {strides = array<i32>} : memref<8x128xbf16, #tpu.memory_space<vmem>>, vector<8x128xbf16>,
    %c0_17 = arith.constant 0 : index
    %c0_18 = arith.constant 0 : index
    %15 = vector.load %arg4[%c0_17, %c0_18] : memref<8x128xbf16, #tpu.memory_space<vmem>>, vector<8x128xbf16>
    %c2 = arith.constant 2 : index
    %c0_19 = arith.constant 0 : index
    %c0_20 = arith.constant 0 : index
    %16 = vector.load %arg2[%c2, %c0_19, %c0_20] : memref<3x128x128xbf16, #tpu.memory_space<vmem>>, vector<1x128x128xbf16>
    %17 = vector.shape_cast %16 : vector<1x128x128xbf16> to vector<128x128xbf16>
    %cst_21 = arith.constant dense<0.000000e+00> : vector<8x128xf32>
    %18 = tpu.matmul %15, %17, %cst_21 {dimension_numbers = #tpu.dot_dimension_numbers<[1], [0], [0], [1], [0, 0, 1, 1], [], []>} : vector<8x128xbf16>, vector<128x128xbf16>, vector<8x128xf32> -> vector<8x128xf32>
    %c0_22 = arith.constant 0 : index
    %c0_23 = arith.constant 0 : index
    %19 = vector.load %arg3[%c0_22, %c0_23] : memref<8x128xf32, #tpu.memory_space<vmem>>, vector<8x128xf32>
    tpu.vector_store %arg3[%c0_22, %c0_23], %18 {strides = array<i32>} : memref<8x128xf32, #tpu.memory_space<vmem>>, vector<8x128xf32>,
    return
  }
  func.func @transform_0(%arg0: i32) -> (i32, i32) {
    %c0_i32 = arith.constant 0 : i32
    %c0_i32_0 = arith.constant 0 : i32
    return %arg0, %c0_i32 : i32, i32
  }
  func.func @transform_1(%arg0: i32) -> (i32, i32, i32) {
    %c0_i32 = arith.constant 0 : i32
    %c0_i32_0 = arith.constant 0 : i32
    %c0_i32_1 = arith.constant 0 : i32
    %c0_i32_2 = arith.constant 0 : i32
    return %c0_i32, %c0_i32_0, %c0_i32_1 : i32, i32, i32
  }
  func.func @transform_2(%arg0: i32) -> (i32, i32) {
    %c0_i32 = arith.constant 0 : i32
    %c0_i32_0 = arith.constant 0 : i32
    return %arg0, %c0_i32 : i32, i32
  }
}

</mosaic_0001>

<llo_original>
// kernel: stacked_nac_forward.2
$region0: #{stacked_nac_forward.2}
  #allocation0 [shape = 'u32[]', space=smem, size = 0x4, offset = 0x4, fixed_abs, tag = 'smem constant byte address 0x4 - core index']
  #allocation1 [shape = 'u32[144,128]{1,0:T(1,128)}', space=vmem, size = 0x12000, scoped, tag = 'internal scratch']
  %s0 = inlined_call_operand.vmem [shape: f32[3,128,128], index: 0, kind: input, shape index: {}]
  %s1 = inlined_call_operand.vmem [shape: f32[3,128,128], index: 1, kind: input, shape index: {}]
  %s2 = inlined_call_operand.vmem [shape: bf16[3,128,128], index: 2, kind: output, shape index: {}]
  %s3 = sld [smem:[#allocation0]]
  $region41: #{stacked_nac_forward.2} parent=0
    _
  %s5 = ssub.s32 1, %s3
  %s6 = scalar_select 0, %s5, %s3
  loop: start=0, step=1, limit=5
  $region2: #{stacked_nac_forward.2} parent=0 // loop_pre_header
    _
  $region3: #{stacked_nac_forward.2} parent=0 // loop_header
    %s8 = sphi 0, %s12
    %p9 = scmp.ge.s32.totalorder %s8, 5
    %s15 = sphi 0, %s27
    %s16 = sphi 0, %s23
    %s17 = sphi 0, %s15
    %s18 = sphi 0, %s16
    %s19 = sphi 0, %s17
    %s20 = sphi 0, %s18
    %s32 = sphi 0, %s34
    %s35 = sphi 0, %s32
    %s36 = sphi 0, %s35
    %s52 = sphi 0, %s36
    %s60 = sphi 0, %s62
    %s63 = sphi 0, %s60
    %s64 = sphi 0, %s63
    %s80 = sphi 0, %s64
    %s88 = sphi 0, %s90
    %s91 = sphi 0, %s88
    %s92 = sphi 0, %s91
    %s108 = sphi 0, %s92
  $region4: #{stacked_nac_forward.2} parent=0 // loop_header_branch
    %11 = sbr.rel (%p9) target = $region8
  $region5: #{stacked_nac_forward.2} parent=0 // loop_body
    %s13 = ssub.s32 %s8, 1
    %s14 = ssub.s32 %s8, 2
    %s21 = sadd.s32 1, %s16
    %p22 = scmp.ge.s32.totalorder %s21, 1
    %s23 = scalar_select %p22, 0, %s21
    %s24 = sadd.s32 1, %s15
    %s25 = scalar_select %p22, %s24, %s15
    %p26 = scmp.ge.s32.totalorder %s25, 3
    %s27 = scalar_select %p26, 0, %s25
    %s28 = ssub.s32 %s15, %s27
    %s29 = ssub.s32 %s16, %s23
    %s30 = sor.u32 %s28, %s29
    %p31 = scmp.eq.s32.totalorder %s30, 0
    %s33 = sadd.s32 %s32, 1
    %s34 = scalar_select %p31, %s32, %s33
    %p37 = pneg %p31
    %p38 = scmp.eq.s32.totalorder %s8, 2
    %p39 = por %p37, %p38
    %p40 = scmp.ne.s32.totalorder %s32, %s35
    %p41 = scmp.eq.s32.totalorder %s8, 0
    %p42 = por %p40, %p41
    %p43 = scmp.ne.s32.totalorder %s32, %s35
    %p44 = scmp.eq.s32.totalorder %s13, 2
    %p45 = por %p43, %p44
    %p46 = scmp.ne.s32.totalorder %s35, %s36
    %p47 = scmp.eq.s32.totalorder %s13, 0
    %p48 = por %p46, %p47
    %p49 = scmp.ne.s32.totalorder %s35, %s36
    %p50 = scmp.eq.s32.totalorder %s14, 2
    %p51 = por %p49, %p50
    %p53 = scmp.ne.s32.totalorder %s36, %s52
    %p54 = scmp.eq.s32.totalorder %s14, 0
    %p55 = por %p53, %p54
    %s56 = ssub.s32 %s15, %s27
    %s57 = ssub.s32 %s16, %s23
    %s58 = sor.u32 %s56, %s57
    %p59 = scmp.eq.s32.totalorder %s58, 0
    %s61 = sadd.s32 %s60, 1
    %s62 = scalar_select %p59, %s60, %s61
    %p65 = pneg %p59
    %p66 = scmp.eq.s32.totalorder %s8, 2
    %p67 = por %p65, %p66
    %p68 = scmp.ne.s32.totalorder %s60, %s63
    %p69 = scmp.eq.s32.totalorder %s8, 0
    %p70 = por %p68, %p69
    %p71 = scmp.ne.s32.totalorder %s60, %s63
    %p72 = scmp.eq.s32.totalorder %s13, 2
    %p73 = por %p71, %p72
    %p74 = scmp.ne.s32.totalorder %s63, %s64
    %p75 = scmp.eq.s32.totalorder %s13, 0
    %p76 = por %p74, %p75
    %p77 = scmp.ne.s32.totalorder %s63, %s64
    %p78 = scmp.eq.s32.totalorder %s14, 2
    %p79 = por %p77, %p78
    %p81 = scmp.ne.s32.totalorder %s64, %s80
    %p82 = scmp.eq.s32.totalorder %s14, 0
    %p83 = por %p81, %p82
    %s84 = ssub.s32 %s15, %s27
    %s85 = ssub.s32 %s16, %s23
    %s86 = sor.u32 %s84, %s85
    %p87 = scmp.eq.s32.totalorder %s86, 0
    %s89 = sadd.s32 %s88, 1
    %s90 = scalar_select %p87, %s88, %s89
    %p93 = pneg %p87
    %p94 = scmp.eq.s32.totalorder %s8, 2
    %p95 = por %p93, %p94
    %p96 = scmp.ne.s32.totalorder %s88, %s91
    %p97 = scmp.eq.s32.totalorder %s8, 0
    %p98 = por %p96, %p97
    %p99 = scmp.ne.s32.totalorder %s88, %s91
    %p100 = scmp.eq.s32.totalorder %s13, 2
    %p101 = por %p99, %p100
    %p102 = scmp.ne.s32.totalorder %s91, %s92
    %p103 = scmp.eq.s32.totalorder %s13, 0
    %p104 = por %p102, %p103
    %p105 = scmp.ne.s32.totalorder %s91, %s92
    %p106 = scmp.eq.s32.totalorder %s14, 2
    %p107 = por %p105, %p106
    %p109 = scmp.ne.s32.totalorder %s92, %s108
    %p110 = scmp.eq.s32.totalorder %s14, 0
    %p111 = por %p109, %p110
    %p112 = scmp.le.s32.totalorder 1, %s8
    %p113 = scmp.lt.s32.totalorder %s8, 4
    %p114 = pnand %p112, %p113
    %p115 = pneg %p114
    // Predicated region
    $region9: #{stacked_nac_forward.2} parent=5 // pred_check
      _
    $region10: #{stacked_nac_forward.2} parent=5 // pred_check_branch
      %117 = sbr.rel (%p114) target = $region12
    $region11: #{stacked_nac_forward.2} parent=5 // pred_region
      %s118 = ssub.s32 %s8, 1
    $region12: #{stacked_nac_forward.2} parent=5 // pred_fallthru
      _
    %p119 = scmp.lt.s32.totalorder %s8, 3
    // Predicated region
    $region13: #{stacked_nac_forward.2} parent=5 // pred_check
      %p120 = pneg %p119
    $region14: #{stacked_nac_forward.2} parent=5 // pred_check_branch
      %122 = sbr.rel (%p120) target = $region16
    $region15: #{stacked_nac_forward.2} parent=5 // pred_region
      // Predicated region
      $region17: #{stacked_nac_forward.2} parent=15 // pred_check
        %p123 = pneg %p42
      $region18: #{stacked_nac_forward.2} parent=15 // pred_check_branch
        %125 = sbr.rel (%p123) target = $region20
      $region19: #{stacked_nac_forward.2} parent=15 // pred_region
        %s126 = smul.u32 16, %s16
        %p127 = scmp.lt.s32.totalorder %s15, 2
        %s128 = scalar_select %p127, %s15, 2
        %p129 = scmp.lt.s32.totalorder %s126, 15
        %s130 = scalar_select %p129, %s126, 15
        %s131 = smul.addr %s128, 16
        %s132 = sadd.s32 %s130, %s131
        %s133 = smul.addr %s132, 8
        %s134 = scalar_lea.vmem %s0, %s133
        %s135 = smul.u32 16, %s16
      $region20: #{stacked_nac_forward.2} parent=15 // pred_fallthru
        _
      // Predicated region
      $region21: #{stacked_nac_forward.2} parent=15 // pred_check
        %p136 = pneg %p70
      $region22: #{stacked_nac_forward.2} parent=15 // pred_check_branch
        %138 = sbr.rel (%p136) target = $region24
      $region23: #{stacked_nac_forward.2} parent=15 // pred_region
        %s139 = smul.u32 16, %s16
        %p140 = scmp.lt.s32.totalorder %s15, 2
        %s141 = scalar_select %p140, %s15, 2
        %p142 = scmp.lt.s32.totalorder %s139, 15
        %s143 = scalar_select %p142, %s139, 15
        %s144 = smul.addr %s141, 16
        %s145 = sadd.s32 %s143, %s144
        %s146 = smul.addr %s145, 8
        %s147 = scalar_lea.vmem %s1, %s146
        %s148 = smul.u32 16, %s16
      $region24: #{stacked_nac_forward.2} parent=15 // pred_fallthru
        _
    $region16: #{stacked_nac_forward.2} parent=5 // pred_fallthru
      _
    %p149 = scmp.le.s32.totalorder 1, %s8
    %p150 = scmp.lt.s32.totalorder %s8, 4
    %p151 = pnand %p149, %p150
    %p152 = pneg %p151
    // Predicated region
    $region25: #{stacked_nac_forward.2} parent=5 // pred_check
      _
    $region26: #{stacked_nac_forward.2} parent=5 // pred_check_branch
      %154 = sbr.rel (%p151) target = $region28
    $region27: #{stacked_nac_forward.2} parent=5 // pred_region
      %s155 = ssub.s32 %s8, 1
      %s156 = smul.u32 16, %s18
      %p157 = scmp.lt.s32.totalorder %s17, 2
      %s158 = scalar_select %p157, %s17, 2
      %p159 = scmp.lt.s32.totalorder %s156, 15
      %s160 = scalar_select %p159, %s156, 15
      %s161 = smul.addr %s158, 16
      %s162 = sadd.s32 %s160, %s161
      %s163 = smul.addr %s162, 8
      %s164 = scalar_lea.vmem %s0, %s163
      %p165 = pneg %p48
      %p166 = pneg %p45
      %s167 = smul.u32 16, %s18
      %p168 = scmp.lt.s32.totalorder %s17, 2
      %s169 = scalar_select %p168, %s17, 2
      %p170 = scmp.lt.s32.totalorder %s167, 15
      %s171 = scalar_select %p170, %s167, 15
      %s172 = smul.addr %s169, 16
      %s173 = sadd.s32 %s171, %s172
      %s174 = smul.addr %s173, 8
      %s175 = scalar_lea.vmem %s1, %s174
      %p176 = pneg %p76
      %p177 = pneg %p73
      %p178 = pneg %p104
      %p179 = pneg %p101
      %s180 = smul.u32 16, %s18
      %p181 = scmp.lt.s32.totalorder %s17, 2
      %s182 = scalar_select %p181, %s17, 2
      %p183 = scmp.lt.s32.totalorder %s180, 15
      %s184 = scalar_select %p183, %s180, 15
      %s185 = smul.addr %s182, 16
      %s186 = sadd.s32 %s184, %s185
      %s187 = smul.addr %s186, 4
      %s188 = scalar_lea.vmem %s2, %s187
      %s189 = smul.u32 16, %s18
      %p190 = scmp.lt.s32.totalorder %s17, 2
      %s191 = scalar_select %p190, %s17, 2
      %p192 = scmp.lt.s32.totalorder %s189, 15
      %s193 = scalar_select %p192, %s189, 15
      %s194 = smul.addr %s191, 16
      %s195 = sadd.s32 %s193, %s194
      %s196 = smul.addr %s195, 8
      %s197 = scalar_lea.vmem %s0, %s196
      %s198 = smul.u32 16, %s18
      %s199 = smul.u32 16, %s18
      %p200 = scmp.lt.s32.totalorder %s17, 2
      %s201 = scalar_select %p200, %s17, 2
      %p202 = scmp.lt.s32.totalorder %s199, 15
      %s203 = scalar_select %p202, %s199, 15
      %s204 = smul.addr %s201, 16
      %s205 = sadd.s32 %s203, %s204
      %s206 = smul.addr %s205, 8
      %s207 = scalar_lea.vmem %s1, %s206
      %s208 = smul.u32 16, %s18
      %s209 = smul.u32 16, %s18
      %p210 = scmp.lt.s32.totalorder %s17, 2
      %s211 = scalar_select %p210, %s17, 2
      %p212 = scmp.lt.s32.totalorder %s209, 15
      %s213 = scalar_select %p212, %s209, 15
      %s214 = smul.addr %s211, 16
      %s215 = sadd.s32 %s213, %s214
      %s216 = smul.addr %s215, 4
      %s217 = scalar_lea.vmem %s2, %s216
      %s218 = smul.u32 16, %s18
      %v219 = vld [vmem:[%s197] sm:$0xff]
      %v220 = vld [vmem:[%s197 + $0x8] sm:$0xff]
      %v221 = vld [vmem:[%s197 + $0x10] sm:$0xff]
      %v222 = vld [vmem:[%s197 + $0x18] sm:$0xff]
      %v223 = vld [vmem:[%s197 + $0x20] sm:$0xff]
      %v224 = vld [vmem:[%s197 + $0x28] sm:$0xff]
      %v225 = vld [vmem:[%s197 + $0x30] sm:$0xff]
      %v226 = vld [vmem:[%s197 + $0x38] sm:$0xff]
      %v227 = vld [vmem:[%s197 + $0x40] sm:$0xff]
      %v228 = vld [vmem:[%s197 + $0x48] sm:$0xff]
      %v229 = vld [vmem:[%s197 + $0x50] sm:$0xff]
      %v230 = vld [vmem:[%s197 + $0x58] sm:$0xff]
      %v231 = vld [vmem:[%s197 + $0x60] sm:$0xff]
      %v232 = vld [vmem:[%s197 + $0x68] sm:$0xff]
      %v233 = vld [vmem:[%s197 + $0x70] sm:$0xff]
      %v234 = vld [vmem:[%s197 + $0x78] sm:$0xff]
      %v235 = vtanh.pop %v219
      %v236 = vtanh.pop %v220
      %v237 = vtanh.pop %v221
      %v238 = vtanh.pop %v222
      %v239 = vtanh.pop %v223
      %v240 = vtanh.pop %v224
      %v241 = vtanh.pop %v225
      %v242 = vtanh.pop %v226
      %v243 = vtanh.pop %v227
      %v244 = vtanh.pop %v228
      %v245 = vtanh.pop %v229
      %v246 = vtanh.pop %v230
      %v247 = vtanh.pop %v231
      %v248 = vtanh.pop %v232
      %v249 = vtanh.pop %v233
      %v250 = vtanh.pop %v234
      %v251 = vld [vmem:[%s207] sm:$0xff]
      %v252 = vld [vmem:[%s207 + $0x8] sm:$0xff]
      %v253 = vld [vmem:[%s207 + $0x10] sm:$0xff]
      %v254 = vld [vmem:[%s207 + $0x18] sm:$0xff]
      %v255 = vld [vmem:[%s207 + $0x20] sm:$0xff]
      %v256 = vld [vmem:[%s207 + $0x28] sm:$0xff]
      %v257 = vld [vmem:[%s207 + $0x30] sm:$0xff]
      %v258 = vld [vmem:[%s207 + $0x38] sm:$0xff]
      %v259 = vld [vmem:[%s207 + $0x40] sm:$0xff]
      %v260 = vld [vmem:[%s207 + $0x48] sm:$0xff]
      %v261 = vld [vmem:[%s207 + $0x50] sm:$0xff]
      %v262 = vld [vmem:[%s207 + $0x58] sm:$0xff]
      %v263 = vld [vmem:[%s207 + $0x60] sm:$0xff]
      %v264 = vld [vmem:[%s207 + $0x68] sm:$0xff]
      %v265 = vld [vmem:[%s207 + $0x70] sm:$0xff]
      %v266 = vld [vmem:[%s207 + $0x78] sm:$0xff]
      %v267 = vxor.u32 %v251, 2147483648
      %v268 = vxor.u32 %v252, 2147483648
      %v269 = vxor.u32 %v253, 2147483648
      %v270 = vxor.u32 %v254, 2147483648
      %v271 = vxor.u32 %v255, 2147483648
      %v272 = vxor.u32 %v256, 2147483648
      %v273 = vxor.u32 %v257, 2147483648
      %v274 = vxor.u32 %v258, 2147483648
      %v275 = vxor.u32 %v259, 2147483648
      %v276 = vxor.u32 %v260, 2147483648
      %v277 = vxor.u32 %v261, 2147483648
      %v278 = vxor.u32 %v262, 2147483648
      %v279 = vxor.u32 %v263, 2147483648
      %v280 = vxor.u32 %v264, 2147483648
      %v281 = vxor.u32 %v265, 2147483648
      %v282 = vxor.u32 %v266, 2147483648
      %v283 = vmul.f32 %v267, 1.442695
      %v284 = vpow.pop %v283
      %v285 = vmul.f32 %v268, 1.442695
      %v286 = vpow.pop %v285
      %v287 = vmul.f32 %v269, 1.442695
      %v288 = vpow.pop %v287
      %v289 = vmul.f32 %v270, 1.442695
      %v290 = vpow.pop %v289
      %v291 = vmul.f32 %v271, 1.442695
      %v292 = vpow.pop %v291
      %v293 = vmul.f32 %v272, 1.442695
      %v294 = vpow.pop %v293
      %v295 = vmul.f32 %v273, 1.442695
      %v296 = vpow.pop %v295
      %v297 = vmul.f32 %v274, 1.442695
      %v298 = vpow.pop %v297
      %v299 = vmul.f32 %v275, 1.442695
      %v300 = vpow.pop %v299
      %v301 = vmul.f32 %v276, 1.442695
      %v302 = vpow.pop %v301
      %v303 = vmul.f32 %v277, 1.442695
      %v304 = vpow.pop %v303
      %v305 = vmul.f32 %v278, 1.442695
      %v306 = vpow.pop %v305
      %v307 = vmul.f32 %v279, 1.442695
      %v308 = vpow.pop %v307
      %v309 = vmul.f32 %v280, 1.442695
      %v310 = vpow.pop %v309
      %v311 = vmul.f32 %v281, 1.442695
      %v312 = vpow.pop %v311
      %v313 = vmul.f32 %v282, 1.442695
      %v314 = vpow.pop %v313
      %v315 = vadd.f32 %v284, 1.0
      %v316 = vadd.f32 %v286, 1.0
      %v317 = vadd.f32 %v288, 1.0
      %v318 = vadd.f32 %v290, 1.0
      %v319 = vadd.f32 %v292, 1.0
      %v320 = vadd.f32 %v294, 1.0
      %v321 = vadd.f32 %v296, 1.0
      %v322 = vadd.f32 %v298, 1.0
      %v323 = vadd.f32 %v300, 1.0
      %v324 = vadd.f32 %v302, 1.0
      %v325 = vadd.f32 %v304, 1.0
      %v326 = vadd.f32 %v306, 1.0
      %v327 = vadd.f32 %v308, 1.0
      %v328 = vadd.f32 %v310, 1.0
      %v329 = vadd.f32 %v312, 1.0
      %v330 = vadd.f32 %v314, 1.0
      %v331 = vrcp.pop %v315
      %v332 = vmul.f32 1.0, %v331
      %v333 = vrcp.pop %v316
      %v334 = vmul.f32 1.0, %v333
      %v335 = vrcp.pop %v317
      %v336 = vmul.f32 1.0, %v335
      %v337 = vrcp.pop %v318
      %v338 = vmul.f32 1.0, %v337
      %v339 = vrcp.pop %v319
      %v340 = vmul.f32 1.0, %v339
      %v341 = vrcp.pop %v320
      %v342 = vmul.f32 1.0, %v341
      %v343 = vrcp.pop %v321
      %v344 = vmul.f32 1.0, %v343
      %v345 = vrcp.pop %v322
      %v346 = vmul.f32 1.0, %v345
      %v347 = vrcp.pop %v323
      %v348 = vmul.f32 1.0, %v347
      %v349 = vrcp.pop %v324
      %v350 = vmul.f32 1.0, %v349
      %v351 = vrcp.pop %v325
      %v352 = vmul.f32 1.0, %v351
      %v353 = vrcp.pop %v326
      %v354 = vmul.f32 1.0, %v353
      %v355 = vrcp.pop %v327
      %v356 = vmul.f32 1.0, %v355
      %v357 = vrcp.pop %v328
      %v358 = vmul.f32 1.0, %v357
      %v359 = vrcp.pop %v329
      %v360 = vmul.f32 1.0, %v359
      %v361 = vrcp.pop %v330
      %v362 = vmul.f32 1.0, %v361
      %v363 = vmul.f32 %v235, %v332
      %v364 = vmul.f32 %v236, %v334
      %v365 = vmul.f32 %v237, %v336
      %v366 = vmul.f32 %v238, %v338
      %v367 = vmul.f32 %v239, %v340
      %v368 = vmul.f32 %v240, %v342
      %v369 = vmul.f32 %v241, %v344
      %v370 = vmul.f32 %v242, %v346
      %v371 = vmul.f32 %v243, %v348
      %v372 = vmul.f32 %v244, %v350
      %v373 = vmul.f32 %v245, %v352
      %v374 = vmul.f32 %v246, %v354
      %v375 = vmul.f32 %v247, %v356
      %v376 = vmul.f32 %v248, %v358
      %v377 = vmul.f32 %v249, %v360
      %v378 = vmul.f32 %v250, %v362
      %v379 = vpack.c.bf16 %v364, %v363
      %v380 = vpack.c.bf16 %v366, %v365
      %v381 = vpack.c.bf16 %v368, %v367
      %v382 = vpack.c.bf16 %v370, %v369
      %v383 = vpack.c.bf16 %v372, %v371
      %v384 = vpack.c.bf16 %v374, %v373
      %v385 = vpack.c.bf16 %v376, %v375
      %v386 = vpack.c.bf16 %v378, %v377
      %v395 = vunpack.c.l.b16 %v379
      %v396 = vunpack.c.h.b16 %v379
      %v397 = vunpack.c.l.b16 %v380
      %v398 = vunpack.c.h.b16 %v380
      %v399 = vunpack.c.l.b16 %v381
      %v400 = vunpack.c.h.b16 %v381
      %v401 = vunpack.c.l.b16 %v382
      %v402 = vunpack.c.h.b16 %v382
      %v403 = vunpack.c.l.b16 %v383
      %v404 = vunpack.c.h.b16 %v383
      %v405 = vunpack.c.l.b16 %v384
      %v406 = vunpack.c.h.b16 %v384
      %v407 = vunpack.c.l.b16 %v385
      %v408 = vunpack.c.h.b16 %v385
      %v409 = vunpack.c.l.b16 %v386
      %v410 = vunpack.c.h.b16 %v386
      %v411 = vpack.c.b16 %v395, %v395
      %v412 = vpack.c.b16 %v396, %v396
      %v413 = vpack.c.b16 %v397, %v397
      %v414 = vpack.c.b16 %v398, %v398
      %v415 = vpack.c.b16 %v399, %v399
      %v416 = vpack.c.b16 %v400, %v400
      %v417 = vpack.c.b16 %v401, %v401
      %v418 = vpack.c.b16 %v402, %v402
      %v419 = vpack.c.b16 %v403, %v403
      %v420 = vpack.c.b16 %v404, %v404
      %v421 = vpack.c.b16 %v405, %v405
      %v422 = vpack.c.b16 %v406, %v406
      %v423 = vpack.c.b16 %v407, %v407
      %v424 = vpack.c.b16 %v408, %v408
      %v425 = vpack.c.b16 %v409, %v409
      %v426 = vpack.c.b16 %v410, %v410
      %443 = vst [vmem:[%s217] sm:$0xf] %v411
      %444 = vst [vmem:[%s217 + $0x4] sm:$0xf] %v412
      %445 = vst [vmem:[%s217 + $0x8] sm:$0xf] %v413
      %446 = vst [vmem:[%s217 + $0xc] sm:$0xf] %v414
      %447 = vst [vmem:[%s217 + $0x10] sm:$0xf] %v415
      %448 = vst [vmem:[%s217 + $0x14] sm:$0xf] %v416
      %449 = vst [vmem:[%s217 + $0x18] sm:$0xf] %v417
      %450 = vst [vmem:[%s217 + $0x1c] sm:$0xf] %v418
      %451 = vst [vmem:[%s217 + $0x20] sm:$0xf] %v419
      %452 = vst [vmem:[%s217 + $0x24] sm:$0xf] %v420
      %453 = vst [vmem:[%s217 + $0x28] sm:$0xf] %v421
      %454 = vst [vmem:[%s217 + $0x2c] sm:$0xf] %v422
      %455 = vst [vmem:[%s217 + $0x30] sm:$0xf] %v423
      %456 = vst [vmem:[%s217 + $0x34] sm:$0xf] %v424
      %457 = vst [vmem:[%s217 + $0x38] sm:$0xf] %v425
      %458 = vst [vmem:[%s217 + $0x3c] sm:$0xf] %v426
      %s459 = smul.u32 16, %s18
      %p460 = scmp.lt.s32.totalorder %s17, 2
      %s461 = scalar_select %p460, %s17, 2
      %p462 = scmp.lt.s32.totalorder %s459, 15
      %s463 = scalar_select %p462, %s459, 15
      %s464 = smul.addr %s461, 16
      %s465 = sadd.s32 %s463, %s464
      %s466 = smul.addr %s465, 4
      %s467 = scalar_lea.vmem %s2, %s466
      // Predicated region
      $region29: #{stacked_nac_forward.2} parent=27 // pred_check
        %p468 = pneg %p101
      $region30: #{stacked_nac_forward.2} parent=27 // pred_check_branch
        %470 = sbr.rel (%p468) target = $region32
      $region31: #{stacked_nac_forward.2} parent=27 // pred_region
        %s471 = smul.u32 16, %s18
      $region32: #{stacked_nac_forward.2} parent=27 // pred_fallthru
        _
    $region28: #{stacked_nac_forward.2} parent=5 // pred_fallthru
      _
    %p472 = scmp.le.s32.totalorder 2, %s8
    // Predicated region
    $region33: #{stacked_nac_forward.2} parent=5 // pred_check
      %p473 = pneg %p472
    $region34: #{stacked_nac_forward.2} parent=5 // pred_check_branch
      %475 = sbr.rel (%p473) target = $region36
    $region35: #{stacked_nac_forward.2} parent=5 // pred_region
      %s476 = ssub.s32 %s8, 2
      // Predicated region
      $region37: #{stacked_nac_forward.2} parent=35 // pred_check
        %p477 = pneg %p107
      $region38: #{stacked_nac_forward.2} parent=35 // pred_check_branch
        %479 = sbr.rel (%p477) target = $region40
      $region39: #{stacked_nac_forward.2} parent=35 // pred_region
        %s480 = smul.u32 16, %s20
        %p481 = scmp.lt.s32.totalorder %s19, 2
        %s482 = scalar_select %p481, %s19, 2
        %p483 = scmp.lt.s32.totalorder %s480, 15
        %s484 = scalar_select %p483, %s480, 15
        %s485 = smul.addr %s482, 16
        %s486 = sadd.s32 %s484, %s485
        %s487 = smul.addr %s486, 4
        %s488 = scalar_lea.vmem %s2, %s487
      $region40: #{stacked_nac_forward.2} parent=35 // pred_fallthru
        _
    $region36: #{stacked_nac_forward.2} parent=5 // pred_fallthru
      _
  $region6: #{stacked_nac_forward.2} parent=0 // loop_footer
    %s12 = sadd.s32 1, %s8
  $region7: #{stacked_nac_forward.2} parent=0 // loop_footer_branch
    %7 = sbr.rel target = $region3
  $region8: #{stacked_nac_forward.2} parent=0 // loop_exit
    _

// kernel: stacked_nac_forward.3
$region0: #{stacked_nac_forward.3}
  #allocation0 [shape = 'u32[]', space=smem, size = 0x4, offset = 0x4, fixed_abs, tag = 'smem constant byte address 0x4 - core index']
  #allocation1 [shape = 'u32[144,128]{1,0:T(1,128)}', space=vmem, size = 0x12000, scoped, tag = 'internal scratch']
  #allocation2 [shape = 'bf16[8,128]{1,0:T(8,128)(2,1)}', space=vmem, size = 0x800, scoped, tag = 'scratch operand']
  #allocation3 [shape = 'bf16[8,128]{1,0:T(8,128)(2,1)}', space=vmem, size = 0x800, scoped, tag = 'scratch operand']
  %s0 = inlined_call_operand.vmem [shape: f32[8,128], index: 0, kind: input, shape index: {}]
  %s1 = inlined_call_operand.vmem [shape: bf16[3,128,128], index: 1, kind: input, shape index: {}]
  %s2 = inlined_call_operand.hbm [shape: f32[8,128], index: 2, kind: output, shape index: {}]
  %s3 = sld [smem:[#allocation0]]
  $region18: #{stacked_nac_forward.3} parent=0
    _
  %s5 = ssub.s32 1, %s3
  %s6 = scalar_select 0, %s5, %s3
  $region1: #{stacked_nac_forward.3} parent=0
    #allocation4 [shape = 'u8[4096]{0}', space=vmem, size = 0x1000, scoped, tag = 'output window, operand 0, single buffered']
    #allocation5 [shape = 's32[1]{0}', space=sflag, size = 0x4, scoped, tag = 'scoped memory for stacked_nac_forward.3']
    %7 = vsyncpa [#allocation5], 0
    // Predicated region
    $region2: #{stacked_nac_forward.3} parent=1 // pred_check
      _
    $region3: #{stacked_nac_forward.3} parent=1 // pred_check_branch
      %9 = sbr.rel (0) target = $region5
    $region4: #{stacked_nac_forward.3} parent=1 // pred_region
      _
    $region5: #{stacked_nac_forward.3} parent=1 // pred_fallthru
      _
    // Predicated region
    $region6: #{stacked_nac_forward.3} parent=1 // pred_check
      _
    $region7: #{stacked_nac_forward.3} parent=1 // pred_check_branch
      %11 = sbr.rel (0) target = $region9
    $region8: #{stacked_nac_forward.3} parent=1 // pred_region
      _
    $region9: #{stacked_nac_forward.3} parent=1 // pred_fallthru
      _
    %v13 = vld [vmem:[%s0] sm:$0xff]
    %v14 = vpack.c.bf16 %v13, %v13
    %15 = vst [vmem:[#allocation2] sm:$0xf] %v14
    %v16 = vld [vmem:[#allocation2] sm:$0xf]
    %v17 = vld [vmem:[%s1] sm:$0xf]
    %v18 = vld [vmem:[%s1 + $0x4] sm:$0xf]
    %v19 = vld [vmem:[%s1 + $0x8] sm:$0xf]
    %v20 = vld [vmem:[%s1 + $0xc] sm:$0xf]
    %v21 = vld [vmem:[%s1 + $0x10] sm:$0xf]
    %v22 = vld [vmem:[%s1 + $0x14] sm:$0xf]
    %v23 = vld [vmem:[%s1 + $0x18] sm:$0xf]
    %v24 = vld [vmem:[%s1 + $0x1c] sm:$0xf]
    %v25 = vld [vmem:[%s1 + $0x20] sm:$0xf]
    %v26 = vld [vmem:[%s1 + $0x24] sm:$0xf]
    %v27 = vld [vmem:[%s1 + $0x28] sm:$0xf]
    %v28 = vld [vmem:[%s1 + $0x2c] sm:$0xf]
    %v29 = vld [vmem:[%s1 + $0x30] sm:$0xf]
    %v30 = vld [vmem:[%s1 + $0x34] sm:$0xf]
    %v31 = vld [vmem:[%s1 + $0x38] sm:$0xf]
    %v32 = vld [vmem:[%s1 + $0x3c] sm:$0xf]
    %v49 = vunpack.c.l.b16 %v17
    %v50 = vunpack.c.l.b16 %v18
    %v51 = vunpack.c.l.b16 %v19
    %v52 = vunpack.c.l.b16 %v20
    %v53 = vunpack.c.l.b16 %v21
    %v54 = vunpack.c.l.b16 %v22
    %v55 = vunpack.c.l.b16 %v23
    %v56 = vunpack.c.l.b16 %v24
    %v57 = vunpack.c.l.b16 %v25
    %v58 = vunpack.c.l.b16 %v26
    %v59 = vunpack.c.l.b16 %v27
    %v60 = vunpack.c.l.b16 %v28
    %v61 = vunpack.c.l.b16 %v29
    %v62 = vunpack.c.l.b16 %v30
    %v63 = vunpack.c.l.b16 %v31
    %v64 = vunpack.c.l.b16 %v32
    %v65 = vpack.c.b16 %v50, %v49
    %v66 = vpack.c.b16 %v52, %v51
    %v67 = vpack.c.b16 %v54, %v53
    %v68 = vpack.c.b16 %v56, %v55
    %v69 = vpack.c.b16 %v58, %v57
    %v70 = vpack.c.b16 %v60, %v59
    %v71 = vpack.c.b16 %v62, %v61
    %v72 = vpack.c.b16 %v64, %v63
    %81 = vmatprep.subr.bf16.mxu0 0
    %82 = vmatpush1.bf16.msra.mxu0 %v65
    %83 = vmatprep.subr.bf16.mxu0 0
    %84 = vmatpush1.bf16.msra.mxu0 %v66
    %85 = vmatprep.subr.bf16.mxu0 0
    %86 = vmatpush1.bf16.msra.mxu0 %v67
    %87 = vmatprep.subr.bf16.mxu0 0
    %88 = vmatpush1.bf16.msra.mxu0 %v68
    %89 = vmatprep.subr.bf16.mxu0 0
    %90 = vmatpush1.bf16.msra.mxu0 %v69
    %91 = vmatprep.subr.bf16.mxu0 0
    %92 = vmatpush1.bf16.msra.mxu0 %v70
    %93 = vmatprep.subr.bf16.mxu0 0
    %94 = vmatpush1.bf16.msra.mxu0 %v71
    %95 = vmatprep.subr.bf16.mxu0 0
    %96 = vmatpush1.bf16.msra.mxu0 %v72
    %97 = vmatprep.subr.bf16.mxu0 0
    %98 = vmatpush1.bf16.msra.mxu0 0
    %99 = vmatprep.subr.bf16.mxu0 0
    %100 = vmatpush1.bf16.msra.mxu0 0
    %101 = vmatprep.subr.bf16.mxu0 0
    %102 = vmatpush1.bf16.msra.mxu0 0
    %103 = vmatprep.subr.bf16.mxu0 0
    %104 = vmatpush1.bf16.msra.mxu0 0
    %105 = vmatprep.subr.bf16.mxu0 0
    %106 = vmatpush1.bf16.msra.mxu0 0
    %107 = vmatprep.subr.bf16.mxu0 0
    %108 = vmatpush1.bf16.msra.mxu0 0
    %109 = vmatprep.subr.bf16.mxu0 0
    %110 = vmatpush1.bf16.msra.mxu0 0
    %111 = vmatprep.subr.bf16.mxu0 0
    %112 = vmatpush1.bf16.msra.mxu0 0
    %113 = vmatprep.mubr.bf16.mxu0 0
    %114 = vmatmul.mubr.bf16.gmra.mrb[0].mxu0 %v16
    %v115 = vpop.f32.mrb[0].mxu0
    %v116 = vadd.f32 0.0, %v115
    %v117 = vpop.f32.mrb[0].mxu0
    %v118 = vpop.f32.mrb[0].mxu0
    %v119 = vpop.f32.mrb[0].mxu0
    %120 = vdwg.mxu0
    %v121 = vpack.c.bf16 %v116, %v116
    %122 = vst [vmem:[#allocation3] sm:$0xf] %v121
    %v123 = vld [vmem:[#allocation3] sm:$0xf]
    %s124 = scalar_lea.vmem %s1, 64
    %v125 = vld [vmem:[%s124] sm:$0xf]
    %v126 = vld [vmem:[%s124 + $0x4] sm:$0xf]
    %v127 = vld [vmem:[%s124 + $0x8] sm:$0xf]
    %v128 = vld [vmem:[%s124 + $0xc] sm:$0xf]
    %v129 = vld [vmem:[%s124 + $0x10] sm:$0xf]
    %v130 = vld [vmem:[%s124 + $0x14] sm:$0xf]
    %v131 = vld [vmem:[%s124 + $0x18] sm:$0xf]
    %v132 = vld [vmem:[%s124 + $0x1c] sm:$0xf]
    %v133 = vld [vmem:[%s124 + $0x20] sm:$0xf]
    %v134 = vld [vmem:[%s124 + $0x24] sm:$0xf]
    %v135 = vld [vmem:[%s124 + $0x28] sm:$0xf]
    %v136 = vld [vmem:[%s124 + $0x2c] sm:$0xf]
    %v137 = vld [vmem:[%s124 + $0x30] sm:$0xf]
    %v138 = vld [vmem:[%s124 + $0x34] sm:$0xf]
    %v139 = vld [vmem:[%s124 + $0x38] sm:$0xf]
    %v140 = vld [vmem:[%s124 + $0x3c] sm:$0xf]
    %v157 = vunpack.c.l.b16 %v125
    %v158 = vunpack.c.l.b16 %v126
    %v159 = vunpack.c.l.b16 %v127
    %v160 = vunpack.c.l.b16 %v128
    %v161 = vunpack.c.l.b16 %v129
    %v162 = vunpack.c.l.b16 %v130
    %v163 = vunpack.c.l.b16 %v131
    %v164 = vunpack.c.l.b16 %v132
    %v165 = vunpack.c.l.b16 %v133
    %v166 = vunpack.c.l.b16 %v134
    %v167 = vunpack.c.l.b16 %v135
    %v168 = vunpack.c.l.b16 %v136
    %v169 = vunpack.c.l.b16 %v137
    %v170 = vunpack.c.l.b16 %v138
    %v171 = vunpack.c.l.b16 %v139
    %v172 = vunpack.c.l.b16 %v140
    %v173 = vpack.c.b16 %v158, %v157
    %v174 = vpack.c.b16 %v160, %v159
    %v175 = vpack.c.b16 %v162, %v161
    %v176 = vpack.c.b16 %v164, %v163
    %v177 = vpack.c.b16 %v166, %v165
    %v178 = vpack.c.b16 %v168, %v167
    %v179 = vpack.c.b16 %v170, %v169
    %v180 = vpack.c.b16 %v172, %v171
    %189 = vmatprep.subr.bf16.mxu0 0
    %190 = vmatpush1.bf16.msra.mxu0 %v173
    %191 = vmatprep.subr.bf16.mxu0 0
    %192 = vmatpush1.bf16.msra.mxu0 %v174
    %193 = vmatprep.subr.bf16.mxu0 0
    %194 = vmatpush1.bf16.msra.mxu0 %v175
    %195 = vmatprep.subr.bf16.mxu0 0
    %196 = vmatpush1.bf16.msra.mxu0 %v176
    %197 = vmatprep.subr.bf16.mxu0 0
    %198 = vmatpush1.bf16.msra.mxu0 %v177
    %199 = vmatprep.subr.bf16.mxu0 0
    %200 = vmatpush1.bf16.msra.mxu0 %v178
    %201 = vmatprep.subr.bf16.mxu0 0
    %202 = vmatpush1.bf16.msra.mxu0 %v179
    %203 = vmatprep.subr.bf16.mxu0 0
    %204 = vmatpush1.bf16.msra.mxu0 %v180
    %205 = vmatprep.subr.bf16.mxu0 0
    %206 = vmatpush1.bf16.msra.mxu0 0
    %207 = vmatprep.subr.bf16.mxu0 0
    %208 = vmatpush1.bf16.msra.mxu0 0
    %209 = vmatprep.subr.bf16.mxu0 0
    %210 = vmatpush1.bf16.msra.mxu0 0
    %211 = vmatprep.subr.bf16.mxu0 0
    %212 = vmatpush1.bf16.msra.mxu0 0
    %213 = vmatprep.subr.bf16.mxu0 0
    %214 = vmatpush1.bf16.msra.mxu0 0
    %215 = vmatprep.subr.bf16.mxu0 0
    %216 = vmatpush1.bf16.msra.mxu0 0
    %217 = vmatprep.subr.bf16.mxu0 0
    %218 = vmatpush1.bf16.msra.mxu0 0
    %219 = vmatprep.subr.bf16.mxu0 0
    %220 = vmatpush1.bf16.msra.mxu0 0
    %221 = vmatprep.mubr.bf16.mxu0 0
    %222 = vmatmul.mubr.bf16.gmra.mrb[0].mxu0 %v123
    %v223 = vpop.f32.mrb[0].mxu0
    %v224 = vadd.f32 0.0, %v223
    %v225 = vpop.f32.mrb[0].mxu0
    %v226 = vpop.f32.mrb[0].mxu0
    %v227 = vpop.f32.mrb[0].mxu0
    %228 = vdwg.mxu0
    %v229 = vpack.c.bf16 %v224, %v224
    %230 = vst [vmem:[#allocation2] sm:$0xf] %v229
    %v231 = vld [vmem:[#allocation2] sm:$0xf]
    %s232 = scalar_lea.vmem %s1, 128
    %v233 = vld [vmem:[%s232] sm:$0xf]
    %v234 = vld [vmem:[%s232 + $0x4] sm:$0xf]
    %v235 = vld [vmem:[%s232 + $0x8] sm:$0xf]
    %v236 = vld [vmem:[%s232 + $0xc] sm:$0xf]
    %v237 = vld [vmem:[%s232 + $0x10] sm:$0xf]
    %v238 = vld [vmem:[%s232 + $0x14] sm:$0xf]
    %v239 = vld [vmem:[%s232 + $0x18] sm:$0xf]
    %v240 = vld [vmem:[%s232 + $0x1c] sm:$0xf]
    %v241 = vld [vmem:[%s232 + $0x20] sm:$0xf]
    %v242 = vld [vmem:[%s232 + $0x24] sm:$0xf]
    %v243 = vld [vmem:[%s232 + $0x28] sm:$0xf]
    %v244 = vld [vmem:[%s232 + $0x2c] sm:$0xf]
    %v245 = vld [vmem:[%s232 + $0x30] sm:$0xf]
    %v246 = vld [vmem:[%s232 + $0x34] sm:$0xf]
    %v247 = vld [vmem:[%s232 + $0x38] sm:$0xf]
    %v248 = vld [vmem:[%s232 + $0x3c] sm:$0xf]
    %v265 = vunpack.c.l.b16 %v233
    %v266 = vunpack.c.l.b16 %v234
    %v267 = vunpack.c.l.b16 %v235
    %v268 = vunpack.c.l.b16 %v236
    %v269 = vunpack.c.l.b16 %v237
    %v270 = vunpack.c.l.b16 %v238
    %v271 = vunpack.c.l.b16 %v239
    %v272 = vunpack.c.l.b16 %v240
    %v273 = vunpack.c.l.b16 %v241
    %v274 = vunpack.c.l.b16 %v242
    %v275 = vunpack.c.l.b16 %v243
    %v276 = vunpack.c.l.b16 %v244
    %v277 = vunpack.c.l.b16 %v245
    %v278 = vunpack.c.l.b16 %v246
    %v279 = vunpack.c.l.b16 %v247
    %v280 = vunpack.c.l.b16 %v248
    %v281 = vpack.c.b16 %v266, %v265
    %v282 = vpack.c.b16 %v268, %v267
    %v283 = vpack.c.b16 %v270, %v269
    %v284 = vpack.c.b16 %v272, %v271
    %v285 = vpack.c.b16 %v274, %v273
    %v286 = vpack.c.b16 %v276, %v275
    %v287 = vpack.c.b16 %v278, %v277
    %v288 = vpack.c.b16 %v280, %v279
    %297 = vmatprep.subr.bf16.mxu0 0
    %298 = vmatpush1.bf16.msra.mxu0 %v281
    %299 = vmatprep.subr.bf16.mxu0 0
    %300 = vmatpush1.bf16.msra.mxu0 %v282
    %301 = vmatprep.subr.bf16.mxu0 0
    %302 = vmatpush1.bf16.msra.mxu0 %v283
    %303 = vmatprep.subr.bf16.mxu0 0
    %304 = vmatpush1.bf16.msra.mxu0 %v284
    %305 = vmatprep.subr.bf16.mxu0 0
    %306 = vmatpush1.bf16.msra.mxu0 %v285
    %307 = vmatprep.subr.bf16.mxu0 0
    %308 = vmatpush1.bf16.msra.mxu0 %v286
    %309 = vmatprep.subr.bf16.mxu0 0
    %310 = vmatpush1.bf16.msra.mxu0 %v287
    %311 = vmatprep.subr.bf16.mxu0 0
    %312 = vmatpush1.bf16.msra.mxu0 %v288
    %313 = vmatprep.subr.bf16.mxu0 0
    %314 = vmatpush1.bf16.msra.mxu0 0
    %315 = vmatprep.subr.bf16.mxu0 0
    %316 = vmatpush1.bf16.msra.mxu0 0
    %317 = vmatprep.subr.bf16.mxu0 0
    %318 = vmatpush1.bf16.msra.mxu0 0
    %319 = vmatprep.subr.bf16.mxu0 0
    %320 = vmatpush1.bf16.msra.mxu0 0
    %321 = vmatprep.subr.bf16.mxu0 0
    %322 = vmatpush1.bf16.msra.mxu0 0
    %323 = vmatprep.subr.bf16.mxu0 0
    %324 = vmatpush1.bf16.msra.mxu0 0
    %325 = vmatprep.subr.bf16.mxu0 0
    %326 = vmatpush1.bf16.msra.mxu0 0
    %327 = vmatprep.subr.bf16.mxu0 0
    %328 = vmatpush1.bf16.msra.mxu0 0
    %329 = vmatprep.mubr.bf16.mxu0 0
    %330 = vmatmul.mubr.bf16.gmra.mrb[0].mxu0 %v231
    %v331 = vpop.f32.mrb[0].mxu0
    %v332 = vadd.f32 0.0, %v331
    %v333 = vpop.f32.mrb[0].mxu0
    %v334 = vpop.f32.mrb[0].mxu0
    %v335 = vpop.f32.mrb[0].mxu0
    %336 = vdwg.mxu0
    %337 = vst [vmem:[#allocation4] sm:$0xff] %v332
    // Predicated region
    $region10: #{stacked_nac_forward.3} parent=1 // pred_check
      _
    $region11: #{stacked_nac_forward.3} parent=1 // pred_check_branch
      %339 = sbr.rel (0) target = $region13
    $region12: #{stacked_nac_forward.3} parent=1 // pred_region
      %s341 = ssub.s32 128, 128
      %342 = vsyncadd [#allocation5], %s341
      %s344 = sshll.u32 [#allocation4], 4
      %s345 = int_to_ptr.vmem [resolvable:$true] %s344
      %347 = dma.vmem_to_hbm [thread:$0]  %s345, 128, %s2, [#allocation5]
    $region13: #{stacked_nac_forward.3} parent=1 // pred_fallthru
      _
    // Predicated region
    $region14: #{stacked_nac_forward.3} parent=1 // pred_check
      _
    $region15: #{stacked_nac_forward.3} parent=1 // pred_check_branch
      %349 = sbr.rel (0) target = $region17
    $region16: #{stacked_nac_forward.3} parent=1 // pred_region
      %350 = dma.done [#allocation5], 128
    $region17: #{stacked_nac_forward.3} parent=1 // pred_fallthru
      _
    %351 = vsyncpa [#allocation5], 1

</llo_original>
